<compile_context>
chip_gen: v7x
topology: tpu7x:2x2x1
jax: 0.10.0
libtpu: 0.0.40
codegen_flags: <defaults>
</compile_context>

<pallas_src>
import math

import jax
import jax.numpy as jnp
from jax import lax
from jax.experimental import pallas as pl
from jax.experimental.pallas import tpu as pltpu


def make_rotation_tables(shape, base=10000, dtype=jnp.float32):
    """JAX port of make_rotations(), already in the interleaved layout the
    kernel consumes.  Returns (cos_full, sin_signed), each of shape
    (*channel_dims, feature_dim) with
        cos_full[..., 2k]   =  cos(angle_k)   cos_full[..., 2k+1] =  cos(angle_k)
        sin_signed[..., 2k] = -sin(angle_k)   sin_signed[..., 2k+1] = +sin(angle_k)
    i.e. real/imag of torch.polar expanded onto the interleaved feature axis.
    Precomputed once at init so the forward pass does zero table re-materialization.
    """
    channel_dims, feature_dim = tuple(shape[:-1]), shape[-1]
    k_max = feature_dim // (2 * len(channel_dims))
    assert feature_dim % k_max == 0, (
        f"shape[-1] ({feature_dim}) not divisible by 2*len(shape[:-1]) "
        f"({2 * len(channel_dims)})")
    theta_ks = 1.0 / (base ** (jnp.arange(k_max, dtype=jnp.float32) / k_max))
    grids = jnp.meshgrid(
        *[jnp.arange(d, dtype=jnp.float32) for d in channel_dims], indexing="ij")
    # (*channel_dims, feature_dim // 2)
    angles = jnp.concatenate([g[..., None] * theta_ks for g in grids], axis=-1)
    c, s = jnp.cos(angles), jnp.sin(angles)
    cos_full = jnp.repeat(c, 2, axis=-1)                                   # c0,c0,c1,c1,...
    sin_signed = jnp.stack([-s, s], axis=-1).reshape(*angles.shape[:-1],   # -s0,+s0,-s1,+s1
                                                     feature_dim)
    return cos_full.astype(dtype), sin_signed.astype(dtype)


def _rope_kernel(x_ref, cos_ref, sin_ref, o_ref):
    # x_ref / o_ref: (tile_t, L) interleaved (r0, i0, r1, i1, ...)
    # cos_ref: c_k duplicated per pair; sin_ref: (-s_k, +s_k) per pair.
    x = x_ref[...]
    L = x.shape[-1]

    # Swap each (even, odd) lane pair: swapped[2k] = x[2k+1], swapped[2k+1] = x[2k].
    # Two XLU rolls (free slots in a memory-bound kernel) + a parity select.
    # NOTE: pltpu.roll requires non-negative shift; L-1 ≡ -1 for a cyclic roll.
    left = pltpu.roll(x, shift=1, axis=x.ndim - 1)       # left[j]  = x[j-1]
    right = pltpu.roll(x, shift=L - 1, axis=x.ndim - 1)  # right[j] = x[j+1] (wrap unused)
    lane = lax.broadcasted_iota(jnp.int32, x.shape, x.ndim - 1)
    swapped = jnp.where((lane & 1) == 0, right, left)

    # Compute in f32 (cast at store); the upcast happens AFTER the rolls so the
    # XLU only moves packed-dtype data.
    xf = x.astype(jnp.float32)
    sw = swapped.astype(jnp.float32)
    c = cos_ref[...].astype(jnp.float32)
    s = sin_ref[...].astype(jnp.float32)

    # out[2k]   = xr*c_k - xi*s_k
    # out[2k+1] = xi*c_k + xr*s_k
    o_ref[...] = (xf * c + sw * s).astype(o_ref.dtype)


def _vmem_capacity_bytes():
    try:
        return int(pltpu.get_tpu_info().vmem_capacity_bytes)
    except Exception:
        return 64 << 20  # conservative (v7x per-TensorCore VMEM)


def _choose_tile_t(Tp, L, itemsize, sub, vmem_cap):
    """Largest row tile (multiple of the sublane packing `sub`, <= Tp) whose
    block is ~4 MiB on 64 MiB-VMEM parts (v7x) / ~8 MiB on 128 MiB parts."""
    target = (4 << 20) if vmem_cap <= (64 << 20) else (8 << 20)
    if Tp <= sub or Tp * L * itemsize <= target:
        return Tp
    rows = (target // (L * itemsize)) // sub * sub
    return int(max(sub, min(rows, (Tp // sub) * sub)))


def _even_grid_adjust(Tp, tile_t, B, sub, vmem_cap):
    """v7x shards 'parallel' grid axes across its 2 TensorCores; keep the total
    number of parallel grid points even so neither core idles."""
    if vmem_cap > (64 << 20) or B % 2 == 0:
        return tile_t
    t = tile_t
    while t > sub and (pl.cdiv(Tp, t) * B) % 2 == 1:
        t -= sub
    return t if (pl.cdiv(Tp, t) * B) % 2 == 0 else tile_t


def ropend_forward(x, t, cos_full, sin_signed):
    """Equivalent of RoPENd.forward(x, t).  t must be a static Python int.
    cos_full / sin_signed come from make_rotation_tables()."""
    assert isinstance(t, int), "t must be a static Python int"
    B, Tp = x.shape[0], x.shape[1]
    D = x.shape[-1]
    assert D % 2 == 0
    rest = x.shape[2:-1]
    L = (int(math.prod(rest)) if rest else 1) * D

    # Free row-major reshape: feature interleaving is the innermost axis.
    x2 = x.reshape(B, Tp, L)

    # Slice the rotation window; the reshape to (Tp, L) is row-major / free.
    # Ship the tables in the activation dtype (halves table HBM+VMEM for bf16).
    tab_dtype = x.dtype if jnp.issubdtype(x.dtype, jnp.floating) else jnp.float32
    c = cos_full[t:t + Tp].reshape(Tp, L).astype(tab_dtype)
    s = sin_signed[t:t + Tp].reshape(Tp, L).astype(tab_dtype)

    itemsize = jnp.dtype(x.dtype).itemsize
    tab_itemsize = jnp.dtype(tab_dtype).itemsize
    sub = max(8, 32 // itemsize)              # sublane packing: f32=8, bf16=16, i8=32
    vmem_cap = _vmem_capacity_bytes()

    tile_t = _choose_tile_t(Tp, L, itemsize, sub, vmem_cap)
    tile_t = _even_grid_adjust(Tp, tile_t, B, sub, vmem_cap)
    grid = (pl.cdiv(Tp, tile_t), B)   # batch innermost -> cos/sin not re-DMA'd per b

    # Honest VMEM footprint: double-buffered x, out, cos, sin blocks + headroom.
    blk_x = tile_t * L * itemsize
    blk_tab = tile_t * L * tab_itemsize
    vmem_needed = 2 * (2 * blk_x) + 2 * (2 * blk_tab) + (2 << 20)
    cap = (56 << 20) if vmem_cap <= (64 << 20) else (100 << 20)
    vmem_limit = int(min(max(vmem_needed, 16 << 20), cap))

    # Bandwidth hint for XLA's scheduler (read x + write out + read tables).
    bytes_accessed = 2 * B * Tp * L * itemsize + 2 * Tp * L * tab_itemsize
    cost = pl.CostEstimate(flops=3 * B * Tp * L, transcendentals=0,
                           bytes_accessed=bytes_accessed)

    out2 = pl.pallas_call(
        _rope_kernel,
        out_shape=jax.ShapeDtypeStruct((B, Tp, L), x.dtype),
        grid=grid,
        in_specs=[
            pl.BlockSpec((None, tile_t, L), lambda tj, b: (b, tj, 0)),  # x (interleaved)
            pl.BlockSpec((tile_t, L), lambda tj, b: (tj, 0)),           # cos (shared over b)
            pl.BlockSpec((tile_t, L), lambda tj, b: (tj, 0)),           # sin (shared over b)
        ],
        out_specs=pl.BlockSpec((None, tile_t, L), lambda tj, b: (b, tj, 0)),
        compiler_params=pltpu.CompilerParams(
            dimension_semantics=("parallel", "parallel"),
            vmem_limit_bytes=vmem_limit),
        cost_estimate=cost,
    )(x2, c, s)

    return out2.reshape(x.shape)


def ropend_reference(x, t, cos_full, sin_signed):
    """Pure-JAX reference matching the PyTorch forward exactly."""
    B, Tp = x.shape[0], x.shape[1]
    xp = x.reshape(*x.shape[:-1], -1, 2)
    xr, xi = xp[..., 0], xp[..., 1]
    c = cos_full[t:t + Tp][..., 0::2]       # cos(angle_k)
    s = sin_signed[t:t + Tp][..., 1::2]     # +sin(angle_k)
    out_r = xr * c - xi * s
    out_i = xr * s + xi * c
    return jnp.stack([out_r, out_i], axis=-1).reshape(x.shape)


if __name__ == "__main__":
    # 2-D RoPE: rotations over a (16, 8) positional grid, feature dim 32
    # (k_max = 32 // (2*2) = 8), as in RoPENd(shape=(16, 8, 32)).
    shape = (16, 8, 32)
    B, Tp, t = 2, 8, 4
    cos_full, sin_signed = make_rotation_tables(shape)   # (16, 8, 32) each

    key = jax.random.PRNGKey(0)
    x = jax.random.normal(key, (B, Tp, shape[1], shape[2]), dtype=jnp.float32)

    out = ropend_forward(x, t, cos_full, sin_signed)
    out = jax.block_until_ready(out)

    ref = ropend_reference(x, t, cos_full, sin_signed)
    assert out.shape == x.shape and out.dtype == x.dtype
    assert jnp.allclose(out, ref, atol=1e-5, rtol=1e-5), "mismatch vs reference"
    print("KERNEL_OK")
</pallas_src>

<mosaic_0001>
module attributes {stable_mosaic.version = 11 : i64} {
  func.func @_rope_kernel(%arg0: i32, %arg1: i32, %arg2: memref<1x8x256xf32, #tpu.memory_space<vmem>>, %arg3: memref<8x256xf32, #tpu.memory_space<vmem>>, %arg4: memref<8x256xf32, #tpu.memory_space<vmem>>, %arg5: memref<1x8x256xf32, #tpu.memory_space<vmem>>) attributes {dimension_semantics = [#tpu.dimension_semantics<parallel>, #tpu.dimension_semantics<parallel>], iteration_bounds = array<i64: 1, 2>, scalar_prefetch = 0 : i64, scratch_operands = 0 : i64, tpu.core_type = #tpu.core_type<tc>, window_params = [{transform_indices = @transform_0, window_bounds = array<i64: 1, 8, 256>}, {transform_indices = @transform_1, window_bounds = array<i64: 8, 256>}, {transform_indices = @transform_2, window_bounds = array<i64: 8, 256>}, {transform_indices = @transform_3, window_bounds = array<i64: 1, 8, 256>}]} {
    %c0 = arith.constant 0 : index
    %c0_0 = arith.constant 0 : index
    %c0_1 = arith.constant 0 : index
    %0 = vector.load %arg2[%c0, %c0_0, %c0_1] : memref<1x8x256xf32, #tpu.memory_space<vmem>>, vector<1x8x256xf32>
    %1 = vector.shape_cast %0 : vector<1x8x256xf32> to vector<8x256xf32>
    %c1_i32 = arith.constant 1 : i32
    %2 = tpu.dynamic_rotate %1 by %c1_i32 dim 1 : vector<8x256xf32>, i32 -> vector<8x256xf32>
    %c255_i32 = arith.constant 255 : i32
    %3 = tpu.dynamic_rotate %1 by %c255_i32 dim 1 : vector<8x256xf32>, i32 -> vector<8x256xf32>
    %4 = tpu.iota {dimensions = array<i32: 1>} : vector<8x256xi32>
    %c1_i32_2 = arith.constant 1 : i32
    %5 = vector.broadcast %c1_i32_2 : i32 to vector<8x256xi32>
    %6 = arith.andi %4, %5 : vector<8x256xi32>
    %c0_i32 = arith.constant 0 : i32
    %7 = vector.broadcast %c0_i32 : i32 to vector<8x256xi32>
    %8 = arith.cmpi eq, %6, %7 : vector<8x256xi32>
    %9 = arith.select %8, %3, %2 : vector<8x256xi1>, vector<8x256xf32>
    %c0_3 = arith.constant 0 : index
    %c0_4 = arith.constant 0 : index
    %10 = vector.load %arg3[%c0_3, %c0_4] : memref<8x256xf32, #tpu.memory_space<vmem>>, vector<8x256xf32>
    %c0_5 = arith.constant 0 : index
    %c0_6 = arith.constant 0 : index
    %11 = vector.load %arg4[%c0_5, %c0_6] : memref<8x256xf32, #tpu.memory_space<vmem>>, vector<8x256xf32>
    %12 = arith.mulf %1, %10 : vector<8x256xf32>
    %13 = arith.mulf %9, %11 : vector<8x256xf32>
    %14 = arith.addf %12, %13 : vector<8x256xf32>
    %c0_7 = arith.constant 0 : index
    %c0_8 = arith.constant 0 : index
    %c0_9 = arith.constant 0 : index
    %15 = vector.load %arg5[%c0_7, %c0_8, %c0_9] : memref<1x8x256xf32, #tpu.memory_space<vmem>>, vector<1x8x256xf32>
    %16 = vector.shape_cast %15 : vector<1x8x256xf32> to vector<8x256xf32>
    %17 = vector.shape_cast %14 : vector<8x256xf32> to vector<1x8x256xf32>
    tpu.vector_store %arg5[%c0_7, %c0_8, %c0_9], %17 {strides = array<i32>} : memref<1x8x256xf32, #tpu.memory_space<vmem>>, vector<1x8x256xf32>,
    return
  }
  func.func @transform_0(%arg0: i32, %arg1: i32) -> (i32, i32, i32) {
    %c0_i32 = arith.constant 0 : i32
    %c0_i32_0 = arith.constant 0 : i32
    return %arg1, %arg0, %c0_i32 : i32, i32, i32
  }
  func.func @transform_1(%arg0: i32, %arg1: i32) -> (i32, i32) {
    %c0_i32 = arith.constant 0 : i32
    %c0_i32_0 = arith.constant 0 : i32
    return %arg0, %c0_i32 : i32, i32
  }
  func.func @transform_2(%arg0: i32, %arg1: i32) -> (i32, i32) {
    %c0_i32 = arith.constant 0 : i32
    %c0_i32_0 = arith.constant 0 : i32
    return %arg0, %c0_i32 : i32, i32
  }
  func.func @transform_3(%arg0: i32, %arg1: i32) -> (i32, i32, i32) {
    %c0_i32 = arith.constant 0 : i32
    %c0_i32_0 = arith.constant 0 : i32
    return %arg1, %arg0, %c0_i32 : i32, i32, i32
  }
}

</mosaic_0001>

<llo_original>
// kernel: tpu_custom_call.1
$region0: #{tpu_custom_call.1}
  #allocation0 [shape = 'u32[]', space=smem, size = 0x4, offset = 0x4, fixed_abs, tag = 'smem constant byte address 0x4 - core index']
  #allocation1 [shape = 'u32[144,128]{1,0:T(1,128)}', space=vmem, size = 0x12000, scoped, tag = 'internal scratch']
  %s0 = inlined_call_operand.hbm [shape: f32[2,8,256], index: 0, kind: input, shape index: {}]
  %s1 = inlined_call_operand.hbm [shape: f32[8,256], index: 1, kind: input, shape index: {}]
  %s2 = inlined_call_operand.hbm [shape: f32[8,256], index: 2, kind: input, shape index: {}]
  %s3 = inlined_call_operand.hbm [shape: f32[2,8,256], index: 3, kind: output, shape index: {}]
  %s4 = sld [smem:[#allocation0]]
  $region57: #{tpu_custom_call.1} parent=0
    _
  %s6 = ssub.s32 1, %s4
  %s7 = scalar_select 0, %s6, %s4
  $region1: #{tpu_custom_call.1} parent=0
    #allocation2 [shape = 'u8[16384]{0}', space=vmem, size = 0x4000, scoped, tag = 'input window, operand 0']
    #allocation3 [shape = 's32[2]{0}', space=sflag, size = 0x8, scoped, tag = 'scoped memory for tpu_custom_call.1']
    #allocation4 [shape = 's32[2]{0}', space=sflag, size = 0x8, scoped, tag = 'scoped memory for tpu_custom_call.1']
    #allocation5 [shape = 'u8[8192]{0}', space=vmem, size = 0x2000, scoped, tag = 'input window, operand 1, single buffered']
    #allocation6 [shape = 's32[1]{0}', space=sflag, size = 0x4, scoped, tag = 'scoped memory for tpu_custom_call.1']
    #allocation7 [shape = 'u8[8192]{0}', space=vmem, size = 0x2000, scoped, tag = 'input window, operand 2, single buffered']
    #allocation8 [shape = 'u8[16384]{0}', space=vmem, size = 0x4000, scoped, tag = 'output window, operand 0']
    %8 = vsyncpa [#allocation3], 0
    %s9 = scalar_lea.sflag [#allocation3], 1
    %10 = vsyncpa %s9, 0
    %11 = vsyncpa [#allocation6], 0
    %12 = vsyncpa [#allocation4], 0
    %s13 = scalar_lea.sflag [#allocation4], 1
    %14 = vsyncpa %s13, 0
    loop: start=0, step=1, limit=4
    $region2: #{tpu_custom_call.1} parent=1 // loop_pre_header
      _
    $region3: #{tpu_custom_call.1} parent=1 // loop_header
      %s16 = sphi 0, %s20
      %p17 = scmp.ge.s32.totalorder %s16, 4
      %s23 = sphi 0, %s35
      %s24 = sphi 0, %s31
      %s25 = sphi 0, %s23
      %s26 = sphi 0, %s24
      %s27 = sphi 0, %s25
      %s28 = sphi 0, %s26
      %s40 = sphi 0, %s42
      %s43 = sphi 0, %s40
      %s44 = sphi 0, %s43
      %s60 = sphi 0, %s44
      %s66 = sphi 0, %s68
      %s69 = sphi 0, %s66
      %s70 = sphi 0, %s69
      %s86 = sphi 0, %s70
      %s92 = sphi 0, %s94
      %s95 = sphi 0, %s92
      %s96 = sphi 0, %s95
      %s112 = sphi 0, %s96
      %s120 = sphi 0, %s122
      %s123 = sphi 0, %s120
      %s124 = sphi 0, %s123
      %s140 = sphi 0, %s124
    $region4: #{tpu_custom_call.1} parent=1 // loop_header_branch
      %19 = sbr.rel (%p17) target = $region8
    $region5: #{tpu_custom_call.1} parent=1 // loop_body
      %s21 = ssub.s32 %s16, 1
      %s22 = ssub.s32 %s16, 2
      %s29 = sadd.s32 1, %s24
      %p30 = scmp.ge.s32.totalorder %s29, 2
      %s31 = scalar_select %p30, 0, %s29
      %s32 = sadd.s32 1, %s23
      %s33 = scalar_select %p30, %s32, %s23
      %p34 = scmp.ge.s32.totalorder %s33, 1
      %s35 = scalar_select %p34, 0, %s33
      %s36 = ssub.s32 %s24, %s31
      %s37 = ssub.s32 %s23, %s35
      %s38 = sor.u32 %s36, %s37
      %p39 = scmp.eq.s32.totalorder %s38, 0
      %s41 = sadd.s32 %s40, 1
      %s42 = scalar_select %p39, %s40, %s41
      %p45 = pneg %p39
      %p46 = scmp.eq.s32.totalorder %s16, 1
      %p47 = por %p45, %p46
      %p48 = scmp.ne.s32.totalorder %s40, %s43
      %p49 = scmp.eq.s32.totalorder %s16, 0
      %p50 = por %p48, %p49
      %p51 = scmp.ne.s32.totalorder %s40, %s43
      %p52 = scmp.eq.s32.totalorder %s21, 1
      %p53 = por %p51, %p52
      %p54 = scmp.ne.s32.totalorder %s43, %s44
      %p55 = scmp.eq.s32.totalorder %s21, 0
      %p56 = por %p54, %p55
      %p57 = scmp.ne.s32.totalorder %s43, %s44
      %p58 = scmp.eq.s32.totalorder %s22, 1
      %p59 = por %p57, %p58
      %p61 = scmp.ne.s32.totalorder %s44, %s60
      %p62 = scmp.eq.s32.totalorder %s22, 0
      %p63 = por %p61, %p62
      %s64 = ssub.s32 %s23, %s35
      %p65 = scmp.eq.s32.totalorder %s64, 0
      %s67 = sadd.s32 %s66, 1
      %s68 = scalar_select %p65, %s66, %s67
      %p71 = pneg %p65
      %p72 = scmp.eq.s32.totalorder %s16, 1
      %p73 = por %p71, %p72
      %p74 = scmp.ne.s32.totalorder %s66, %s69
      %p75 = scmp.eq.s32.totalorder %s16, 0
      %p76 = por %p74, %p75
      %p77 = scmp.ne.s32.totalorder %s66, %s69
      %p78 = scmp.eq.s32.totalorder %s21, 1
      %p79 = por %p77, %p78
      %p80 = scmp.ne.s32.totalorder %s69, %s70
      %p81 = scmp.eq.s32.totalorder %s21, 0
      %p82 = por %p80, %p81
      %p83 = scmp.ne.s32.totalorder %s69, %s70
      %p84 = scmp.eq.s32.totalorder %s22, 1
      %p85 = por %p83, %p84
      %p87 = scmp.ne.s32.totalorder %s70, %s86
      %p88 = scmp.eq.s32.totalorder %s22, 0
      %p89 = por %p87, %p88
      %s90 = ssub.s32 %s23, %s35
      %p91 = scmp.eq.s32.totalorder %s90, 0
      %s93 = sadd.s32 %s92, 1
      %s94 = scalar_select %p91, %s92, %s93
      %p97 = pneg %p91
      %p98 = scmp.eq.s32.totalorder %s16, 1
      %p99 = por %p97, %p98
      %p100 = scmp.ne.s32.totalorder %s92, %s95
      %p101 = scmp.eq.s32.totalorder %s16, 0
      %p102 = por %p100, %p101
      %p103 = scmp.ne.s32.totalorder %s92, %s95
      %p104 = scmp.eq.s32.totalorder %s21, 1
      %p105 = por %p103, %p104
      %p106 = scmp.ne.s32.totalorder %s95, %s96
      %p107 = scmp.eq.s32.totalorder %s21, 0
      %p108 = por %p106, %p107
      %p109 = scmp.ne.s32.totalorder %s95, %s96
      %p110 = scmp.eq.s32.totalorder %s22, 1
      %p111 = por %p109, %p110
      %p113 = scmp.ne.s32.totalorder %s96, %s112
      %p114 = scmp.eq.s32.totalorder %s22, 0
      %p115 = por %p113, %p114
      %s116 = ssub.s32 %s24, %s31
      %s117 = ssub.s32 %s23, %s35
      %s118 = sor.u32 %s116, %s117
      %p119 = scmp.eq.s32.totalorder %s118, 0
      %s121 = sadd.s32 %s120, 1
      %s122 = scalar_select %p119, %s120, %s121
      %p125 = pneg %p119
      %p126 = scmp.eq.s32.totalorder %s16, 1
      %p127 = por %p125, %p126
      %p128 = scmp.ne.s32.totalorder %s120, %s123
      %p129 = scmp.eq.s32.totalorder %s16, 0
      %p130 = por %p128, %p129
      %p131 = scmp.ne.s32.totalorder %s120, %s123
      %p132 = scmp.eq.s32.totalorder %s21, 1
      %p133 = por %p131, %p132
      %p134 = scmp.ne.s32.totalorder %s123, %s124
      %p135 = scmp.eq.s32.totalorder %s21, 0
      %p136 = por %p134, %p135
      %p137 = scmp.ne.s32.totalorder %s123, %s124
      %p138 = scmp.eq.s32.totalorder %s22, 1
      %p139 = por %p137, %p138
      %p141 = scmp.ne.s32.totalorder %s124, %s140
      %p142 = scmp.eq.s32.totalorder %s22, 0
      %p143 = por %p141, %p142
      %p144 = scmp.le.s32.totalorder 1, %s16
      %p145 = scmp.lt.s32.totalorder %s16, 3
      %p146 = pnand %p144, %p145
      %p147 = pneg %p146
      // Predicated region
      $region9: #{tpu_custom_call.1} parent=5 // pred_check
        _
      $region10: #{tpu_custom_call.1} parent=5 // pred_check_branch
        %149 = sbr.rel (%p146) target = $region12
      $region11: #{tpu_custom_call.1} parent=5 // pred_region
        %s150 = ssub.s32 %s16, 1
        // Predicated region
        $region13: #{tpu_custom_call.1} parent=11 // pred_check
          %p151 = pneg %p82
        $region14: #{tpu_custom_call.1} parent=11 // pred_check_branch
          %153 = sbr.rel (%p151) target = $region16
        $region15: #{tpu_custom_call.1} parent=11 // pred_region
          %s155 = ssub.s32 256, 256
          %156 = vsyncadd [#allocation6], %s155
          %s157 = smul.addr %s25, 2
          %s158 = smul.addr %s157, 128
          %s159 = scalar_lea.hbm %s1, %s158
          %s161 = sshll.u32 [#allocation5], 4
          %s162 = int_to_ptr.vmem [resolvable:$true] %s161
          %164 = dma.hbm_to_vmem [thread:$0]  %s159, 256, %s162, [#allocation6]
        $region16: #{tpu_custom_call.1} parent=11 // pred_fallthru
          _
        // Predicated region
        $region17: #{tpu_custom_call.1} parent=11 // pred_check
          %p165 = pneg %p108
        $region18: #{tpu_custom_call.1} parent=11 // pred_check_branch
          %167 = sbr.rel (%p165) target = $region20
        $region19: #{tpu_custom_call.1} parent=11 // pred_region
          %s169 = ssub.s32 256, 256
          %170 = vsyncadd [#allocation6], %s169
          %s171 = smul.addr %s25, 2
          %s172 = smul.addr %s171, 128
          %s173 = scalar_lea.hbm %s2, %s172
          %s175 = sshll.u32 [#allocation7], 4
          %s176 = int_to_ptr.vmem [resolvable:$true] %s175
          %178 = dma.hbm_to_vmem [thread:$0]  %s173, 256, %s176, [#allocation6]
        $region20: #{tpu_custom_call.1} parent=11 // pred_fallthru
          _
      $region12: #{tpu_custom_call.1} parent=5 // pred_fallthru
        _
      %p179 = scmp.lt.s32.totalorder %s16, 2
      // Predicated region
      $region21: #{tpu_custom_call.1} parent=5 // pred_check
        %p180 = pneg %p179
      $region22: #{tpu_custom_call.1} parent=5 // pred_check_branch
        %182 = sbr.rel (%p180) target = $region24
      $region23: #{tpu_custom_call.1} parent=5 // pred_region
        // Predicated region
        $region25: #{tpu_custom_call.1} parent=23 // pred_check
          %p183 = pneg %p50
        $region26: #{tpu_custom_call.1} parent=23 // pred_check_branch
          %185 = sbr.rel (%p183) target = $region28
        $region27: #{tpu_custom_call.1} parent=23 // pred_region
          %s186 = sand.u32 %s40, 1
          %s187 = scalar_lea.sflag [#allocation3], %s186
          %s188 = sand.u32 %s40, 1
          %s189 = smul.addr %s188, 16
          %s190 = scalar_lea.vmem [#allocation2], %s189
          %s192 = ssub.s32 256, 256
          %193 = vsyncadd %s187, %s192
          %s194 = smul.addr %s23, 2
          %s195 = smul.addr %s24, 2
          %s196 = sadd.s32 %s194, %s195
          %s197 = smul.addr %s196, 128
          %s198 = scalar_lea.hbm %s0, %s197
          %s200 = sshll.u32 %s190, 4
          %s201 = int_to_ptr.vmem [resolvable:$true] %s200
          %203 = dma.hbm_to_vmem [thread:$0]  %s198, 256, %s201, %s187
        $region28: #{tpu_custom_call.1} parent=23 // pred_fallthru
          _
      $region24: #{tpu_custom_call.1} parent=5 // pred_fallthru
        _
      %p204 = scmp.le.s32.totalorder 1, %s16
      %p205 = scmp.lt.s32.totalorder %s16, 3
      %p206 = pnand %p204, %p205
      %p207 = pneg %p206
      // Predicated region
      $region29: #{tpu_custom_call.1} parent=5 // pred_check
        _
      $region30: #{tpu_custom_call.1} parent=5 // pred_check_branch
        %209 = sbr.rel (%p206) target = $region32
      $region31: #{tpu_custom_call.1} parent=5 // pred_region
        %s210 = ssub.s32 %s16, 1
        %s211 = sand.u32 %s43, 1
        %s212 = scalar_lea.sflag [#allocation3], %s211
        %s213 = sand.u32 %s43, 1
        %s214 = smul.addr %s213, 16
        %s215 = scalar_lea.vmem [#allocation2], %s214
        // Predicated region
        $region33: #{tpu_custom_call.1} parent=31 // pred_check
          %p216 = pneg %p56
        $region34: #{tpu_custom_call.1} parent=31 // pred_check_branch
          %218 = sbr.rel (%p216) target = $region36
        $region35: #{tpu_custom_call.1} parent=31 // pred_region
          %219 = dma.done %s212, 256
        $region36: #{tpu_custom_call.1} parent=31 // pred_fallthru
          _
        // Predicated region
        $region37: #{tpu_custom_call.1} parent=31 // pred_check
          %p220 = pneg %p82
        $region38: #{tpu_custom_call.1} parent=31 // pred_check_branch
          %222 = sbr.rel (%p220) target = $region40
        $region39: #{tpu_custom_call.1} parent=31 // pred_region
          %223 = dma.done [#allocation6], 256
        $region40: #{tpu_custom_call.1} parent=31 // pred_fallthru
          _
        // Predicated region
        $region41: #{tpu_custom_call.1} parent=31 // pred_check
          %p224 = pneg %p108
        $region42: #{tpu_custom_call.1} parent=31 // pred_check_branch
          %226 = sbr.rel (%p224) target = $region44
        $region43: #{tpu_custom_call.1} parent=31 // pred_region
          %227 = dma.done [#allocation6], 256
        $region44: #{tpu_custom_call.1} parent=31 // pred_fallthru
          _
        %s228 = sand.u32 %s43, 1
        %s229 = scalar_lea.sflag [#allocation3], %s228
        %s230 = sand.u32 %s43, 1
        %s231 = smul.addr %s230, 16
        %s232 = scalar_lea.vmem [#allocation2], %s231
        %p233 = pneg %p56
        %p234 = pneg %p53
        %p235 = pneg %p82
        %p236 = pneg %p79
        %p237 = pneg %p108
        %p238 = pneg %p105
        %p239 = pneg %p136
        %p240 = pneg %p133
        %s241 = sand.u32 %s123, 1
        %s242 = scalar_lea.sflag [#allocation4], %s241
        %s243 = sand.u32 %s123, 1
        %s244 = smul.addr %s243, 16
        %s245 = scalar_lea.vmem [#allocation8], %s244
        %v246 = vld [vmem:[%s215] sm:$0xff]
        %v247 = vld [vmem:[%s215 + $0x8] sm:$0xff]
        %248 = vrot.lane.b32.xlu0 %v246, 1
        %v249 = vpop.permute.xlu0 %248
        %250 = vrot.lane.b32.xlu0 %v247, 1
        %v251 = vpop.permute.xlu0 %250
        %v252 = vlaneseq
        %v253 = vand.u32 %v252, 127
        %vm254 = vcmp.lt.s32.totalorder %v253, 1
        %v255 = vsel %vm254, %v249, %v251
        %v256 = vsel %vm254, %v251, %v249
        %257 = vrot.lane.b32.xlu0 %v246, 127
        %v258 = vpop.permute.xlu0 %257
        %259 = vrot.lane.b32.xlu0 %v247, 127
        %v260 = vpop.permute.xlu0 %259
        %vm261 = vcmp.lt.s32.totalorder %v253, 127
        %v262 = vsel %vm261, %v258, %v260
        %v263 = vsel %vm261, %v260, %v258
        %v264 = vadd.s32 %v253, 128
        %v265 = vand.u32 %v253, 1
        %v266 = vand.u32 %v264, 1
        %vm267 = vcmp.eq.s32.totalorder %v265, 0
        %vm268 = vcmp.eq.s32.totalorder %v266, 0
        %v269 = vsel %vm267, %v262, %v256
        %v270 = vsel %vm268, %v263, %v255
        %v271 = vld [vmem:[#allocation5] sm:$0xff]
        %v272 = vld [vmem:[#allocation5 + $0x8] sm:$0xff]
        %v273 = vld [vmem:[#allocation7] sm:$0xff]
        %v274 = vld [vmem:[#allocation7 + $0x8] sm:$0xff]
        %v275 = vmul.f32 %v246, %v271
        %v276 = vmul.f32 %v247, %v272
        %v277 = vmul.f32 %v269, %v273
        %v278 = vmul.f32 %v270, %v274
        %v279 = vadd.f32 %v275, %v277
        %v280 = vadd.f32 %v276, %v278
        %281 = vst [vmem:[%s245] sm:$0xff] %v279
        %282 = vst [vmem:[%s245 + $0x8] sm:$0xff] %v280
        %s283 = sand.u32 %s123, 1
        %s284 = scalar_lea.sflag [#allocation4], %s283
        %s285 = sand.u32 %s123, 1
        %s286 = smul.addr %s285, 16
        %s287 = scalar_lea.vmem [#allocation8], %s286
        // Predicated region
        $region45: #{tpu_custom_call.1} parent=31 // pred_check
          %p288 = pneg %p133
        $region46: #{tpu_custom_call.1} parent=31 // pred_check_branch
          %290 = sbr.rel (%p288) target = $region48
        $region47: #{tpu_custom_call.1} parent=31 // pred_region
          %s292 = ssub.s32 256, 256
          %293 = vsyncadd %s284, %s292
          %s294 = smul.addr %s25, 2
          %s295 = smul.addr %s26, 2
          %s296 = sadd.s32 %s294, %s295
          %s297 = smul.addr %s296, 128
          %s298 = scalar_lea.hbm %s3, %s297
          %s300 = sshll.u32 %s287, 4
          %s301 = int_to_ptr.vmem [resolvable:$true] %s300
          %303 = dma.vmem_to_hbm [thread:$0]  %s301, 256, %s298, %s284
        $region48: #{tpu_custom_call.1} parent=31 // pred_fallthru
          _
      $region32: #{tpu_custom_call.1} parent=5 // pred_fallthru
        _
      %p304 = scmp.le.s32.totalorder 2, %s16
      // Predicated region
      $region49: #{tpu_custom_call.1} parent=5 // pred_check
        %p305 = pneg %p304
      $region50: #{tpu_custom_call.1} parent=5 // pred_check_branch
        %307 = sbr.rel (%p305) target = $region52
      $region51: #{tpu_custom_call.1} parent=5 // pred_region
        %s308 = ssub.s32 %s16, 2
        // Predicated region
        $region53: #{tpu_custom_call.1} parent=51 // pred_check
          %p309 = pneg %p139
        $region54: #{tpu_custom_call.1} parent=51 // pred_check_branch
          %311 = sbr.rel (%p309) target = $region56
        $region55: #{tpu_custom_call.1} parent=51 // pred_region
          %s312 = sand.u32 %s124, 1
          %s313 = scalar_lea.sflag [#allocation4], %s312
          %s314 = sand.u32 %s124, 1
          %s315 = smul.addr %s314, 16
          %s316 = scalar_lea.vmem [#allocation8], %s315
          %317 = dma.done %s313, 256
        $region56: #{tpu_custom_call.1} parent=51 // pred_fallthru
          _
      $region52: #{tpu_custom_call.1} parent=5 // pred_fallthru
        _
    $region6: #{tpu_custom_call.1} parent=1 // loop_footer
      %s20 = sadd.s32 1, %s16
    $region7: #{tpu_custom_call.1} parent=1 // loop_footer_branch
      %15 = sbr.rel target = $region3
    $region8: #{tpu_custom_call.1} parent=1 // loop_exit
      _
    %318 = vsyncpa [#allocation3], 1
    %s319 = scalar_lea.sflag [#allocation3], 1
    %320 = vsyncpa %s319, 1
    %321 = vsyncpa [#allocation6], 1
    %322 = vsyncpa [#allocation4], 1
    %s323 = scalar_lea.sflag [#allocation4], 1
    %324 = vsyncpa %s323, 1

</llo_original>
